<compile_context>
chip_gen: v7x
topology: tpu7x:2x2x1
jax: 0.10.0
libtpu: 0.0.40
codegen_flags: <defaults>
</compile_context>

<pallas_src>
import functools

import jax
import jax.numpy as jnp
from jax.experimental import pallas as pl
from jax.experimental.pallas import tpu as pltpu


def _hslstm_kernel(num_layers, hidden_size, x_ref, w_ref, b_ref, fc_ref, out_ref):
    L = num_layers
    H = hidden_size
    T, B, I = x_ref.shape
    LH = L * H
    G = 4 * LH

    # Unpack the single bf16 weight slab (one DMA instead of many tiny ones).
    w_pack = w_ref[0:LH, :]            # (LH, 4LH) wavefront-fused recurrent weight
    w_x0 = w_ref[LH:LH + I, :]         # (I, 4LH)  layer-0 input proj (packed cols)
    b_pack = b_ref[...]                # (1, 4LH)  fused biases (f32, g cols pre-x2)

    # Hoisted layer-0 input projection for ALL timesteps (time-major), bias
    # folded in.  xp[t] is a contiguous (B, 4LH) slab per tick.
    x2d = x_ref[...].reshape(T * B, I).astype(jnp.bfloat16)
    xp = jnp.dot(x2d, w_x0, preferred_element_type=jnp.float32) + b_pack
    xp = xp.reshape(T, B, G)

    # Packed wavefront state: columns l*H:(l+1)*H hold layer l's h / c.
    h_bf = jnp.zeros((B, LH), jnp.bfloat16)
    h_f32 = jnp.zeros((B, LH), jnp.float32)
    c = jnp.zeros((B, LH), jnp.float32)

    col = jax.lax.broadcasted_iota(jnp.int32, (1, LH), 1)

    n_ticks = T + L - 1
    for tick in range(n_ticks):        # fully unrolled (static, small)
        # Addend: layer-0 columns need xp[tick] while layer 0 is active; for
        # wind-down ticks any xp slab works (layer-1.. columns of xp equal the
        # bias and the stale layer-0 columns are frozen below).
        add = xp[min(tick, T - 1)]
        if tick == 0:
            comb = add                 # h is all zero -> the dot would be zero
        else:
            comb = jnp.dot(h_bf, w_pack, preferred_element_type=jnp.float32) + add

        # One full-slab sigmoid; tanh(g) recovered as 2*sigmoid(2g) - 1 since
        # the g columns were pre-scaled by 2 in prepare_params.
        sig = jax.nn.sigmoid(comb)
        i_p = sig[:, 0 * LH:1 * LH]
        f_p = sig[:, 1 * LH:2 * LH]
        g_p = 2.0 * sig[:, 2 * LH:3 * LH] - 1.0
        o_p = sig[:, 3 * LH:4 * LH]
        c_new = f_p * c + i_p * g_p
        h_new = o_p * jnp.tanh(c_new)

        # Freeze layers outside the wavefront.  Only the first / last L-1
        # ticks need a mask; steady-state ticks pay nothing.
        lo = max(0, tick - T + 1)
        hi = min(tick, L - 1)
        if lo > 0 or hi < L - 1:
            mask = (col >= lo * H) & (col < (hi + 1) * H)
            c = jnp.where(mask, c_new, c)
            h_f32 = jnp.where(mask, h_new, h_f32)
        else:
            c = c_new
            h_f32 = h_new
        h_bf = h_f32.astype(jnp.bfloat16)

    # Top layer's hidden at the last timestep -> final FC (f32).
    h_top = h_f32[:, (L - 1) * H:LH]
    fc_w = fc_ref[0:H, :]
    fc_b = fc_ref[H:H + 1, :]
    out_ref[...] = jnp.dot(h_top, fc_w, preferred_element_type=jnp.float32) + fc_b


def prepare_params(params):
    """One-time weight prep (transpose / pack / pre-scale / cast) — off the
    per-call path.  Builds the wavefront-fused packed layout."""
    lstm = params["lstm"]
    L = len(lstm)
    H = lstm[0][1].shape[1]            # w_hh: (4H, H)
    I = lstm[0][0].shape[1]            # w_ih0: (4H, I)
    G = 4 * L * H

    def scatter(w_t, layer):
        # w_t: (K, 4H), gate order i,f,g,o along columns.  Gate q of `layer`
        # goes to packed columns (q*L + layer)*H : +H; the g gate is
        # pre-scaled by 2 so the kernel needs only one sigmoid pass.
        out = jnp.zeros((w_t.shape[0], G), jnp.float32)
        for q in range(4):
            blk = w_t[:, q * H:(q + 1) * H]
            if q == 2:
                blk = blk * 2.0
            c0 = (q * L + layer) * H
            out = out.at[:, c0:c0 + H].set(blk)
        return out

    # W_pack row block l multiplies h_l; it feeds layer l's recurrent gates
    # and layer (l+1)'s input gates.
    w_pack = jnp.zeros((L * H, G), jnp.float32)
    b_pack = jnp.zeros((1, G), jnp.float32)
    for l in range(L):
        w_ih, w_hh, b_ih, b_hh = lstm[l]
        rows = slice(l * H, (l + 1) * H)
        w_pack = w_pack.at[rows, :].add(scatter(jnp.transpose(w_hh), l))
        if l + 1 < L:
            w_ih_up = lstm[l + 1][0]
            w_pack = w_pack.at[rows, :].add(scatter(jnp.transpose(w_ih_up), l + 1))
        b_pack = b_pack + scatter((b_ih + b_hh).reshape(1, 4 * H), l)

    w_x0 = scatter(jnp.transpose(lstm[0][0]), 0)                    # (I, G)
    w_slab = jnp.concatenate([w_pack, w_x0], axis=0).astype(jnp.bfloat16)

    fc_w, fc_b = params["fc"]
    fc_wb = jnp.concatenate([jnp.transpose(fc_w), fc_b.reshape(1, -1)],
                            axis=0).astype(jnp.float32)             # (H+1, O)
    return (w_slab, b_pack, fc_wb)


def hslstm_forward(x, prep, num_layers, hidden_size, output_size):
    """x: (B, T, I) in the PyTorch layout (f32). Returns logits (B, O)."""
    B, T, _ = x.shape
    x_tm = jnp.transpose(x, (1, 0, 2))   # time-major: layout plumbing only
    w_slab, b_pack, fc_wb = prep
    vmem = pl.BlockSpec(memory_space=pltpu.MemorySpace.VMEM)
    kernel = functools.partial(_hslstm_kernel, num_layers, hidden_size)
    return pl.pallas_call(
        kernel,
        out_shape=jax.ShapeDtypeStruct((B, output_size), jnp.float32),
        in_specs=[vmem, vmem, vmem, vmem],
        out_specs=vmem,
    )(x_tm, w_slab, b_pack, fc_wb)


def init_params(key, num_layers, input_size, hidden_size, output_size):
    """Deterministic synthetic init matching nn.LSTMCell / nn.Linear shapes."""
    k = 1.0 / jnp.sqrt(jnp.float32(hidden_size))
    params = {"lstm": [], "fc": None}
    keys = jax.random.split(key, num_layers * 4 + 2)
    ki = 0
    for l in range(num_layers):
        in_sz = input_size if l == 0 else hidden_size
        w_ih = jax.random.uniform(keys[ki], (4 * hidden_size, in_sz),
                                  jnp.float32, -k, k); ki += 1
        w_hh = jax.random.uniform(keys[ki], (4 * hidden_size, hidden_size),
                                  jnp.float32, -k, k); ki += 1
        b_ih = jax.random.uniform(keys[ki], (4 * hidden_size,),
                                  jnp.float32, -k, k); ki += 1
        b_hh = jax.random.uniform(keys[ki], (4 * hidden_size,),
                                  jnp.float32, -k, k); ki += 1
        params["lstm"].append((w_ih, w_hh, b_ih, b_hh))
    kf = 1.0 / jnp.sqrt(jnp.float32(hidden_size))
    fc_w = jax.random.uniform(keys[ki], (output_size, hidden_size),
                              jnp.float32, -kf, kf); ki += 1
    fc_b = jax.random.uniform(keys[ki], (output_size,),
                              jnp.float32, -kf, kf)
    params["fc"] = (fc_w, fc_b)
    return params


def reference_forward(x, params, num_layers, hidden_size):
    """Pure-JAX f32 reference of the PyTorch forward (eval mode, y=None)."""
    B, T, _ = x.shape
    h = [jnp.zeros((B, hidden_size), jnp.float32) for _ in range(num_layers)]
    c = [jnp.zeros((B, hidden_size), jnp.float32) for _ in range(num_layers)]
    H = hidden_size
    for t in range(T):
        for l in range(num_layers):
            inp = x[:, t, :] if l == 0 else h[l - 1]
            w_ih, w_hh, b_ih, b_hh = params["lstm"][l]
            gates = inp @ w_ih.T + b_ih + h[l] @ w_hh.T + b_hh
            i_g = jax.nn.sigmoid(gates[:, 0:H])
            f_g = jax.nn.sigmoid(gates[:, H:2 * H])
            g_g = jnp.tanh(gates[:, 2 * H:3 * H])
            o_g = jax.nn.sigmoid(gates[:, 3 * H:4 * H])
            c[l] = f_g * c[l] + i_g * g_g
            h[l] = o_g * jnp.tanh(c[l])
    fc_w, fc_b = params["fc"]
    return h[-1] @ fc_w.T + fc_b


if __name__ == "__main__":
    # Small shapes consistent with the module:
    #   max_len (input_size) = 16 -> hidden_size = 32, num_layers = 2,
    #   output_size = 4, batch = 8, seq = 8.
    batch, seq_len = 8, 8
    input_size = 16
    hidden_size = input_size * 2
    num_layers = 2
    output_size = 4

    key = jax.random.PRNGKey(0)
    kx, kp = jax.random.split(key)
    x = jax.random.normal(kx, (batch, seq_len, input_size), jnp.float32)
    params = init_params(kp, num_layers, input_size, hidden_size, output_size)

    prep = prepare_params(params)  # one-time weight prep (not per call)
    out = hslstm_forward(x, prep, num_layers, hidden_size, output_size)
    out = jax.block_until_ready(out)

    ref = reference_forward(x, params, num_layers, hidden_size)
    assert out.shape == (batch, output_size)
    # Tolerance loosened vs. an all-f32 version: MXU operands are bf16.
    assert jnp.allclose(out, ref, atol=5e-2, rtol=5e-2), (
        f"mismatch: max abs err = {jnp.max(jnp.abs(out - ref))}")

    print("KERNEL_OK")
</pallas_src>

<mosaic_0001>
module attributes {stable_mosaic.version = 11 : i64} {
  func.func @_hslstm_kernel(%arg0: memref<8x8x16xf32, #tpu.memory_space<vmem>>, %arg1: memref<80x256xbf16, #tpu.memory_space<vmem>>, %arg2: memref<1x256xf32, #tpu.memory_space<vmem>>, %arg3: memref<33x4xf32, #tpu.memory_space<vmem>>, %arg4: memref<8x4xf32, #tpu.memory_space<vmem>>) attributes {dimension_semantics = [], scalar_prefetch = 0 : i64, scratch_operands = 0 : i64, tpu.core_type = #tpu.core_type<tc>} {
    %c0 = arith.constant 0 : index
    %c0_0 = arith.constant 0 : index
    %0 = vector.load %arg1[%c0, %c0_0] : memref<80x256xbf16, #tpu.memory_space<vmem>>, vector<64x256xbf16>
    %c64 = arith.constant 64 : index
    %c0_1 = arith.constant 0 : index
    %1 = vector.load %arg1[%c64, %c0_1] : memref<80x256xbf16, #tpu.memory_space<vmem>>, vector<16x256xbf16>
    %c0_2 = arith.constant 0 : index
    %c0_3 = arith.constant 0 : index
    %2 = vector.load %arg2[%c0_2, %c0_3] : memref<1x256xf32, #tpu.memory_space<vmem>>, vector<1x256xf32>
    %c0_4 = arith.constant 0 : index
    %c0_5 = arith.constant 0 : index
    %c0_6 = arith.constant 0 : index
    %3 = vector.load %arg0[%c0_4, %c0_5, %c0_6] : memref<8x8x16xf32, #tpu.memory_space<vmem>>, vector<8x8x16xf32>
    %4 = vector.shape_cast %3 : vector<8x8x16xf32> to vector<64x16xf32>
    %5 = arith.truncf %4 : vector<64x16xf32> to vector<64x16xbf16>
    %cst = arith.constant dense<0.000000e+00> : vector<64x256xf32>
    %6 = tpu.matmul %5, %1, %cst {dimension_numbers = #tpu.dot_dimension_numbers<[1], [0], [0], [1], [0, 0, 1, 1], [], []>} : vector<64x16xbf16>, vector<16x256xbf16>, vector<64x256xf32> -> vector<64x256xf32>
    %7 = vector.broadcast %2 : vector<1x256xf32> to vector<64x256xf32>
    %8 = arith.addf %6, %7 : vector<64x256xf32>
    %9 = vector.shape_cast %8 : vector<64x256xf32> to vector<8x8x256xf32>
    %cst_7 = arith.constant 0.000000e+00 : f32
    %10 = vector.broadcast %cst_7 : f32 to vector<8x64xf32>
    %cst_8 = arith.constant 0.000000e+00 : f32
    %11 = vector.broadcast %cst_8 : f32 to vector<8x64xf32>
    %12 = tpu.iota {dimensions = array<i32: 1>} : vector<1x64xi32>
    %13 = vector.extract_strided_slice %9 {offsets = [0, 0, 0], sizes = [1, 8, 256], strides = [1, 1, 1]} : vector<8x8x256xf32> to vector<1x8x256xf32>
    %14 = vector.shape_cast %13 : vector<1x8x256xf32> to vector<8x256xf32>
    %15 = arith.negf %14 : vector<8x256xf32>
    %16 = math.exp %15 : vector<8x256xf32>
    %cst_9 = arith.constant 1.000000e+00 : f32
    %17 = vector.broadcast %cst_9 : f32 to vector<8x256xf32>
    %18 = arith.addf %17, %16 : vector<8x256xf32>
    %19 = arith.divf %17, %18 : vector<8x256xf32>
    %20 = vector.extract_strided_slice %19 {offsets = [0, 0], sizes = [8, 64], strides = [1, 1]} : vector<8x256xf32> to vector<8x64xf32>
    %21 = vector.extract_strided_slice %19 {offsets = [0, 64], sizes = [8, 64], strides = [1, 1]} : vector<8x256xf32> to vector<8x64xf32>
    %22 = vector.extract_strided_slice %19 {offsets = [0, 128], sizes = [8, 64], strides = [1, 1]} : vector<8x256xf32> to vector<8x64xf32>
    %cst_10 = arith.constant 2.000000e+00 : f32
    %23 = vector.broadcast %cst_10 : f32 to vector<8x64xf32>
    %24 = arith.mulf %23, %22 : vector<8x64xf32>
    %cst_11 = arith.constant 1.000000e+00 : f32
    %25 = vector.broadcast %cst_11 : f32 to vector<8x64xf32>
    %26 = arith.subf %24, %25 : vector<8x64xf32>
    %27 = vector.extract_strided_slice %19 {offsets = [0, 192], sizes = [8, 64], strides = [1, 1]} : vector<8x256xf32> to vector<8x64xf32>
    %28 = arith.mulf %21, %11 : vector<8x64xf32>
    %29 = arith.mulf %20, %26 : vector<8x64xf32>
    %30 = arith.addf %28, %29 : vector<8x64xf32>
    %31 = math.tanh %30 : vector<8x64xf32>
    %32 = arith.mulf %27, %31 : vector<8x64xf32>
    %c0_i32 = arith.constant 0 : i32
    %33 = vector.broadcast %c0_i32 : i32 to vector<1x64xi32>
    %34 = arith.cmpi sge, %12, %33 : vector<1x64xi32>
    %c32_i32 = arith.constant 32 : i32
    %35 = vector.broadcast %c32_i32 : i32 to vector<1x64xi32>
    %36 = arith.cmpi slt, %12, %35 : vector<1x64xi32>
    %37 = arith.andi %34, %36 : vector<1x64xi1>
    %38 = vector.shape_cast %37 : vector<1x64xi1> to vector<1x64xi1>
    %39 = vector.broadcast %38 : vector<1x64xi1> to vector<8x64xi1>
    %40 = arith.select %39, %30, %11 : vector<8x64xi1>, vector<8x64xf32>
    %41 = vector.shape_cast %37 : vector<1x64xi1> to vector<1x64xi1>
    %42 = vector.broadcast %41 : vector<1x64xi1> to vector<8x64xi1>
    %43 = arith.select %42, %32, %10 : vector<8x64xi1>, vector<8x64xf32>
    %44 = arith.truncf %43 : vector<8x64xf32> to vector<8x64xbf16>
    %45 = vector.extract_strided_slice %9 {offsets = [1, 0, 0], sizes = [1, 8, 256], strides = [1, 1, 1]} : vector<8x8x256xf32> to vector<1x8x256xf32>
    %46 = vector.shape_cast %45 : vector<1x8x256xf32> to vector<8x256xf32>
    %cst_12 = arith.constant dense<0.000000e+00> : vector<8x256xf32>
    %47 = tpu.matmul %44, %0, %cst_12 {dimension_numbers = #tpu.dot_dimension_numbers<[1], [0], [0], [1], [0, 0, 1, 1], [], []>} : vector<8x64xbf16>, vector<64x256xbf16>, vector<8x256xf32> -> vector<8x256xf32>
    %48 = arith.addf %47, %46 : vector<8x256xf32>
    %49 = arith.negf %48 : vector<8x256xf32>
    %50 = math.exp %49 : vector<8x256xf32>
    %cst_13 = arith.constant 1.000000e+00 : f32
    %51 = vector.broadcast %cst_13 : f32 to vector<8x256xf32>
    %52 = arith.addf %51, %50 : vector<8x256xf32>
    %53 = arith.divf %51, %52 : vector<8x256xf32>
    %54 = vector.extract_strided_slice %53 {offsets = [0, 0], sizes = [8, 64], strides = [1, 1]} : vector<8x256xf32> to vector<8x64xf32>
    %55 = vector.extract_strided_slice %53 {offsets = [0, 64], sizes = [8, 64], strides = [1, 1]} : vector<8x256xf32> to vector<8x64xf32>
    %56 = vector.extract_strided_slice %53 {offsets = [0, 128], sizes = [8, 64], strides = [1, 1]} : vector<8x256xf32> to vector<8x64xf32>
    %cst_14 = arith.constant 2.000000e+00 : f32
    %57 = vector.broadcast %cst_14 : f32 to vector<8x64xf32>
    %58 = arith.mulf %57, %56 : vector<8x64xf32>
    %cst_15 = arith.constant 1.000000e+00 : f32
    %59 = vector.broadcast %cst_15 : f32 to vector<8x64xf32>
    %60 = arith.subf %58, %59 : vector<8x64xf32>
    %61 = vector.extract_strided_slice %53 {offsets = [0, 192], sizes = [8, 64], strides = [1, 1]} : vector<8x256xf32> to vector<8x64xf32>
    %62 = arith.mulf %55, %40 : vector<8x64xf32>
    %63 = arith.mulf %54, %60 : vector<8x64xf32>
    %64 = arith.addf %62, %63 : vector<8x64xf32>
    %65 = math.tanh %64 : vector<8x64xf32>
    %66 = arith.mulf %61, %65 : vector<8x64xf32>
    %67 = arith.truncf %66 : vector<8x64xf32> to vector<8x64xbf16>
    %68 = vector.extract_strided_slice %9 {offsets = [2, 0, 0], sizes = [1, 8, 256], strides = [1, 1, 1]} : vector<8x8x256xf32> to vector<1x8x256xf32>
    %69 = vector.shape_cast %68 : vector<1x8x256xf32> to vector<8x256xf32>
    %cst_16 = arith.constant dense<0.000000e+00> : vector<8x256xf32>
    %70 = tpu.matmul %67, %0, %cst_16 {dimension_numbers = #tpu.dot_dimension_numbers<[1], [0], [0], [1], [0, 0, 1, 1], [], []>} : vector<8x64xbf16>, vector<64x256xbf16>, vector<8x256xf32> -> vector<8x256xf32>
    %71 = arith.addf %70, %69 : vector<8x256xf32>
    %72 = arith.negf %71 : vector<8x256xf32>
    %73 = math.exp %72 : vector<8x256xf32>
    %cst_17 = arith.constant 1.000000e+00 : f32
    %74 = vector.broadcast %cst_17 : f32 to vector<8x256xf32>
    %75 = arith.addf %74, %73 : vector<8x256xf32>
    %76 = arith.divf %74, %75 : vector<8x256xf32>
    %77 = vector.extract_strided_slice %76 {offsets = [0, 0], sizes = [8, 64], strides = [1, 1]} : vector<8x256xf32> to vector<8x64xf32>
    %78 = vector.extract_strided_slice %76 {offsets = [0, 64], sizes = [8, 64], strides = [1, 1]} : vector<8x256xf32> to vector<8x64xf32>
    %79 = vector.extract_strided_slice %76 {offsets = [0, 128], sizes = [8, 64], strides = [1, 1]} : vector<8x256xf32> to vector<8x64xf32>
    %cst_18 = arith.constant 2.000000e+00 : f32
    %80 = vector.broadcast %cst_18 : f32 to vector<8x64xf32>
    %81 = arith.mulf %80, %79 : vector<8x64xf32>
    %cst_19 = arith.constant 1.000000e+00 : f32
    %82 = vector.broadcast %cst_19 : f32 to vector<8x64xf32>
    %83 = arith.subf %81, %82 : vector<8x64xf32>
    %84 = vector.extract_strided_slice %76 {offsets = [0, 192], sizes = [8, 64], strides = [1, 1]} : vector<8x256xf32> to vector<8x64xf32>
    %85 = arith.mulf %78, %64 : vector<8x64xf32>
    %86 = arith.mulf %77, %83 : vector<8x64xf32>
    %87 = arith.addf %85, %86 : vector<8x64xf32>
    %88 = math.tanh %87 : vector<8x64xf32>
    %89 = arith.mulf %84, %88 : vector<8x64xf32>
    %90 = arith.truncf %89 : vector<8x64xf32> to vector<8x64xbf16>
    %91 = vector.extract_strided_slice %9 {offsets = [3, 0, 0], sizes = [1, 8, 256], strides = [1, 1, 1]} : vector<8x8x256xf32> to vector<1x8x256xf32>
    %92 = vector.shape_cast %91 : vector<1x8x256xf32> to vector<8x256xf32>
    %cst_20 = arith.constant dense<0.000000e+00> : vector<8x256xf32>
    %93 = tpu.matmul %90, %0, %cst_20 {dimension_numbers = #tpu.dot_dimension_numbers<[1], [0], [0], [1], [0, 0, 1, 1], [], []>} : vector<8x64xbf16>, vector<64x256xbf16>, vector<8x256xf32> -> vector<8x256xf32>
    %94 = arith.addf %93, %92 : vector<8x256xf32>
    %95 = arith.negf %94 : vector<8x256xf32>
    %96 = math.exp %95 : vector<8x256xf32>
    %cst_21 = arith.constant 1.000000e+00 : f32
    %97 = vector.broadcast %cst_21 : f32 to vector<8x256xf32>
    %98 = arith.addf %97, %96 : vector<8x256xf32>
    %99 = arith.divf %97, %98 : vector<8x256xf32>
    %100 = vector.extract_strided_slice %99 {offsets = [0, 0], sizes = [8, 64], strides = [1, 1]} : vector<8x256xf32> to vector<8x64xf32>
    %101 = vector.extract_strided_slice %99 {offsets = [0, 64], sizes = [8, 64], strides = [1, 1]} : vector<8x256xf32> to vector<8x64xf32>
    %102 = vector.extract_strided_slice %99 {offsets = [0, 128], sizes = [8, 64], strides = [1, 1]} : vector<8x256xf32> to vector<8x64xf32>
    %cst_22 = arith.constant 2.000000e+00 : f32
    %103 = vector.broadcast %cst_22 : f32 to vector<8x64xf32>
    %104 = arith.mulf %103, %102 : vector<8x64xf32>
    %cst_23 = arith.constant 1.000000e+00 : f32
    %105 = vector.broadcast %cst_23 : f32 to vector<8x64xf32>
    %106 = arith.subf %104, %105 : vector<8x64xf32>
    %107 = vector.extract_strided_slice %99 {offsets = [0, 192], sizes = [8, 64], strides = [1, 1]} : vector<8x256xf32> to vector<8x64xf32>
    %108 = arith.mulf %101, %87 : vector<8x64xf32>
    %109 = arith.mulf %100, %106 : vector<8x64xf32>
    %110 = arith.addf %108, %109 : vector<8x64xf32>
    %111 = math.tanh %110 : vector<8x64xf32>
    %112 = arith.mulf %107, %111 : vector<8x64xf32>
    %113 = arith.truncf %112 : vector<8x64xf32> to vector<8x64xbf16>
    %114 = vector.extract_strided_slice %9 {offsets = [4, 0, 0], sizes = [1, 8, 256], strides = [1, 1, 1]} : vector<8x8x256xf32> to vector<1x8x256xf32>
    %115 = vector.shape_cast %114 : vector<1x8x256xf32> to vector<8x256xf32>
    %cst_24 = arith.constant dense<0.000000e+00> : vector<8x256xf32>
    %116 = tpu.matmul %113, %0, %cst_24 {dimension_numbers = #tpu.dot_dimension_numbers<[1], [0], [0], [1], [0, 0, 1, 1], [], []>} : vector<8x64xbf16>, vector<64x256xbf16>, vector<8x256xf32> -> vector<8x256xf32>
    %117 = arith.addf %116, %115 : vector<8x256xf32>
    %118 = arith.negf %117 : vector<8x256xf32>
    %119 = math.exp %118 : vector<8x256xf32>
    %cst_25 = arith.constant 1.000000e+00 : f32
    %120 = vector.broadcast %cst_25 : f32 to vector<8x256xf32>
    %121 = arith.addf %120, %119 : vector<8x256xf32>
    %122 = arith.divf %120, %121 : vector<8x256xf32>
    %123 = vector.extract_strided_slice %122 {offsets = [0, 0], sizes = [8, 64], strides = [1, 1]} : vector<8x256xf32> to vector<8x64xf32>
    %124 = vector.extract_strided_slice %122 {offsets = [0, 64], sizes = [8, 64], strides = [1, 1]} : vector<8x256xf32> to vector<8x64xf32>
    %125 = vector.extract_strided_slice %122 {offsets = [0, 128], sizes = [8, 64], strides = [1, 1]} : vector<8x256xf32> to vector<8x64xf32>
    %cst_26 = arith.constant 2.000000e+00 : f32
    %126 = vector.broadcast %cst_26 : f32 to vector<8x64xf32>
    %127 = arith.mulf %126, %125 : vector<8x64xf32>
    %cst_27 = arith.constant 1.000000e+00 : f32
    %128 = vector.broadcast %cst_27 : f32 to vector<8x64xf32>
    %129 = arith.subf %127, %128 : vector<8x64xf32>
    %130 = vector.extract_strided_slice %122 {offsets = [0, 192], sizes = [8, 64], strides = [1, 1]} : vector<8x256xf32> to vector<8x64xf32>
    %131 = arith.mulf %124, %110 : vector<8x64xf32>
    %132 = arith.mulf %123, %129 : vector<8x64xf32>
    %133 = arith.addf %131, %132 : vector<8x64xf32>
    %134 = math.tanh %133 : vector<8x64xf32>
    %135 = arith.mulf %130, %134 : vector<8x64xf32>
    %136 = arith.truncf %135 : vector<8x64xf32> to vector<8x64xbf16>
    %137 = vector.extract_strided_slice %9 {offsets = [5, 0, 0], sizes = [1, 8, 256], strides = [1, 1, 1]} : vector<8x8x256xf32> to vector<1x8x256xf32>
    %138 = vector.shape_cast %137 : vector<1x8x256xf32> to vector<8x256xf32>
    %cst_28 = arith.constant dense<0.000000e+00> : vector<8x256xf32>
    %139 = tpu.matmul %136, %0, %cst_28 {dimension_numbers = #tpu.dot_dimension_numbers<[1], [0], [0], [1], [0, 0, 1, 1], [], []>} : vector<8x64xbf16>, vector<64x256xbf16>, vector<8x256xf32> -> vector<8x256xf32>
    %140 = arith.addf %139, %138 : vector<8x256xf32>
    %141 = arith.negf %140 : vector<8x256xf32>
    %142 = math.exp %141 : vector<8x256xf32>
    %cst_29 = arith.constant 1.000000e+00 : f32
    %143 = vector.broadcast %cst_29 : f32 to vector<8x256xf32>
    %144 = arith.addf %143, %142 : vector<8x256xf32>
    %145 = arith.divf %143, %144 : vector<8x256xf32>
    %146 = vector.extract_strided_slice %145 {offsets = [0, 0], sizes = [8, 64], strides = [1, 1]} : vector<8x256xf32> to vector<8x64xf32>
    %147 = vector.extract_strided_slice %145 {offsets = [0, 64], sizes = [8, 64], strides = [1, 1]} : vector<8x256xf32> to vector<8x64xf32>
    %148 = vector.extract_strided_slice %145 {offsets = [0, 128], sizes = [8, 64], strides = [1, 1]} : vector<8x256xf32> to vector<8x64xf32>
    %cst_30 = arith.constant 2.000000e+00 : f32
    %149 = vector.broadcast %cst_30 : f32 to vector<8x64xf32>
    %150 = arith.mulf %149, %148 : vector<8x64xf32>
    %cst_31 = arith.constant 1.000000e+00 : f32
    %151 = vector.broadcast %cst_31 : f32 to vector<8x64xf32>
    %152 = arith.subf %150, %151 : vector<8x64xf32>
    %153 = vector.extract_strided_slice %145 {offsets = [0, 192], sizes = [8, 64], strides = [1, 1]} : vector<8x256xf32> to vector<8x64xf32>
    %154 = arith.mulf %147, %133 : vector<8x64xf32>
    %155 = arith.mulf %146, %152 : vector<8x64xf32>
    %156 = arith.addf %154, %155 : vector<8x64xf32>
    %157 = math.tanh %156 : vector<8x64xf32>
    %158 = arith.mulf %153, %157 : vector<8x64xf32>
    %159 = arith.truncf %158 : vector<8x64xf32> to vector<8x64xbf16>
    %160 = vector.extract_strided_slice %9 {offsets = [6, 0, 0], sizes = [1, 8, 256], strides = [1, 1, 1]} : vector<8x8x256xf32> to vector<1x8x256xf32>
    %161 = vector.shape_cast %160 : vector<1x8x256xf32> to vector<8x256xf32>
    %cst_32 = arith.constant dense<0.000000e+00> : vector<8x256xf32>
    %162 = tpu.matmul %159, %0, %cst_32 {dimension_numbers = #tpu.dot_dimension_numbers<[1], [0], [0], [1], [0, 0, 1, 1], [], []>} : vector<8x64xbf16>, vector<64x256xbf16>, vector<8x256xf32> -> vector<8x256xf32>
    %163 = arith.addf %162, %161 : vector<8x256xf32>
    %164 = arith.negf %163 : vector<8x256xf32>
    %165 = math.exp %164 : vector<8x256xf32>
    %cst_33 = arith.constant 1.000000e+00 : f32
    %166 = vector.broadcast %cst_33 : f32 to vector<8x256xf32>
    %167 = arith.addf %166, %165 : vector<8x256xf32>
    %168 = arith.divf %166, %167 : vector<8x256xf32>
    %169 = vector.extract_strided_slice %168 {offsets = [0, 0], sizes = [8, 64], strides = [1, 1]} : vector<8x256xf32> to vector<8x64xf32>
    %170 = vector.extract_strided_slice %168 {offsets = [0, 64], sizes = [8, 64], strides = [1, 1]} : vector<8x256xf32> to vector<8x64xf32>
    %171 = vector.extract_strided_slice %168 {offsets = [0, 128], sizes = [8, 64], strides = [1, 1]} : vector<8x256xf32> to vector<8x64xf32>
    %cst_34 = arith.constant 2.000000e+00 : f32
    %172 = vector.broadcast %cst_34 : f32 to vector<8x64xf32>
    %173 = arith.mulf %172, %171 : vector<8x64xf32>
    %cst_35 = arith.constant 1.000000e+00 : f32
    %174 = vector.broadcast %cst_35 : f32 to vector<8x64xf32>
    %175 = arith.subf %173, %174 : vector<8x64xf32>
    %176 = vector.extract_strided_slice %168 {offsets = [0, 192], sizes = [8, 64], strides = [1, 1]} : vector<8x256xf32> to vector<8x64xf32>
    %177 = arith.mulf %170, %156 : vector<8x64xf32>
    %178 = arith.mulf %169, %175 : vector<8x64xf32>
    %179 = arith.addf %177, %178 : vector<8x64xf32>
    %180 = math.tanh %179 : vector<8x64xf32>
    %181 = arith.mulf %176, %180 : vector<8x64xf32>
    %182 = arith.truncf %181 : vector<8x64xf32> to vector<8x64xbf16>
    %183 = vector.extract_strided_slice %9 {offsets = [7, 0, 0], sizes = [1, 8, 256], strides = [1, 1, 1]} : vector<8x8x256xf32> to vector<1x8x256xf32>
    %184 = vector.shape_cast %183 : vector<1x8x256xf32> to vector<8x256xf32>
    %cst_36 = arith.constant dense<0.000000e+00> : vector<8x256xf32>
    %185 = tpu.matmul %182, %0, %cst_36 {dimension_numbers = #tpu.dot_dimension_numbers<[1], [0], [0], [1], [0, 0, 1, 1], [], []>} : vector<8x64xbf16>, vector<64x256xbf16>, vector<8x256xf32> -> vector<8x256xf32>
    %186 = arith.addf %185, %184 : vector<8x256xf32>
    %187 = arith.negf %186 : vector<8x256xf32>
    %188 = math.exp %187 : vector<8x256xf32>
    %cst_37 = arith.constant 1.000000e+00 : f32
    %189 = vector.broadcast %cst_37 : f32 to vector<8x256xf32>
    %190 = arith.addf %189, %188 : vector<8x256xf32>
    %191 = arith.divf %189, %190 : vector<8x256xf32>
    %192 = vector.extract_strided_slice %191 {offsets = [0, 0], sizes = [8, 64], strides = [1, 1]} : vector<8x256xf32> to vector<8x64xf32>
    %193 = vector.extract_strided_slice %191 {offsets = [0, 64], sizes = [8, 64], strides = [1, 1]} : vector<8x256xf32> to vector<8x64xf32>
    %194 = vector.extract_strided_slice %191 {offsets = [0, 128], sizes = [8, 64], strides = [1, 1]} : vector<8x256xf32> to vector<8x64xf32>
    %cst_38 = arith.constant 2.000000e+00 : f32
    %195 = vector.broadcast %cst_38 : f32 to vector<8x64xf32>
    %196 = arith.mulf %195, %194 : vector<8x64xf32>
    %cst_39 = arith.constant 1.000000e+00 : f32
    %197 = vector.broadcast %cst_39 : f32 to vector<8x64xf32>
    %198 = arith.subf %196, %197 : vector<8x64xf32>
    %199 = vector.extract_strided_slice %191 {offsets = [0, 192], sizes = [8, 64], strides = [1, 1]} : vector<8x256xf32> to vector<8x64xf32>
    %200 = arith.mulf %193, %179 : vector<8x64xf32>
    %201 = arith.mulf %192, %198 : vector<8x64xf32>
    %202 = arith.addf %200, %201 : vector<8x64xf32>
    %203 = math.tanh %202 : vector<8x64xf32>
    %204 = arith.mulf %199, %203 : vector<8x64xf32>
    %205 = arith.truncf %204 : vector<8x64xf32> to vector<8x64xbf16>
    %206 = vector.extract_strided_slice %9 {offsets = [7, 0, 0], sizes = [1, 8, 256], strides = [1, 1, 1]} : vector<8x8x256xf32> to vector<1x8x256xf32>
    %207 = vector.shape_cast %206 : vector<1x8x256xf32> to vector<8x256xf32>
    %cst_40 = arith.constant dense<0.000000e+00> : vector<8x256xf32>
    %208 = tpu.matmul %205, %0, %cst_40 {dimension_numbers = #tpu.dot_dimension_numbers<[1], [0], [0], [1], [0, 0, 1, 1], [], []>} : vector<8x64xbf16>, vector<64x256xbf16>, vector<8x256xf32> -> vector<8x256xf32>
    %209 = arith.addf %208, %207 : vector<8x256xf32>
    %210 = arith.negf %209 : vector<8x256xf32>
    %211 = math.exp %210 : vector<8x256xf32>
    %cst_41 = arith.constant 1.000000e+00 : f32
    %212 = vector.broadcast %cst_41 : f32 to vector<8x256xf32>
    %213 = arith.addf %212, %211 : vector<8x256xf32>
    %214 = arith.divf %212, %213 : vector<8x256xf32>
    %215 = vector.extract_strided_slice %214 {offsets = [0, 0], sizes = [8, 64], strides = [1, 1]} : vector<8x256xf32> to vector<8x64xf32>
    %216 = vector.extract_strided_slice %214 {offsets = [0, 64], sizes = [8, 64], strides = [1, 1]} : vector<8x256xf32> to vector<8x64xf32>
    %217 = vector.extract_strided_slice %214 {offsets = [0, 128], sizes = [8, 64], strides = [1, 1]} : vector<8x256xf32> to vector<8x64xf32>
    %cst_42 = arith.constant 2.000000e+00 : f32
    %218 = vector.broadcast %cst_42 : f32 to vector<8x64xf32>
    %219 = arith.mulf %218, %217 : vector<8x64xf32>
    %cst_43 = arith.constant 1.000000e+00 : f32
    %220 = vector.broadcast %cst_43 : f32 to vector<8x64xf32>
    %221 = arith.subf %219, %220 : vector<8x64xf32>
    %222 = vector.extract_strided_slice %214 {offsets = [0, 192], sizes = [8, 64], strides = [1, 1]} : vector<8x256xf32> to vector<8x64xf32>
    %223 = arith.mulf %216, %202 : vector<8x64xf32>
    %224 = arith.mulf %215, %221 : vector<8x64xf32>
    %225 = arith.addf %223, %224 : vector<8x64xf32>
    %226 = math.tanh %225 : vector<8x64xf32>
    %227 = arith.mulf %222, %226 : vector<8x64xf32>
    %c32_i32_44 = arith.constant 32 : i32
    %228 = vector.broadcast %c32_i32_44 : i32 to vector<1x64xi32>
    %229 = arith.cmpi sge, %12, %228 : vector<1x64xi32>
    %c64_i32 = arith.constant 64 : i32
    %230 = vector.broadcast %c64_i32 : i32 to vector<1x64xi32>
    %231 = arith.cmpi slt, %12, %230 : vector<1x64xi32>
    %232 = arith.andi %229, %231 : vector<1x64xi1>
    %233 = vector.shape_cast %232 : vector<1x64xi1> to vector<1x64xi1>
    %234 = vector.broadcast %233 : vector<1x64xi1> to vector<8x64xi1>
    %235 = arith.select %234, %227, %204 : vector<8x64xi1>, vector<8x64xf32>
    %236 = vector.extract_strided_slice %235 {offsets = [0, 32], sizes = [8, 32], strides = [1, 1]} : vector<8x64xf32> to vector<8x32xf32>
    %c0_45 = arith.constant 0 : index
    %c0_46 = arith.constant 0 : index
    %237 = vector.load %arg3[%c0_45, %c0_46] : memref<33x4xf32, #tpu.memory_space<vmem>>, vector<32x4xf32>
    %c32 = arith.constant 32 : index
    %c0_47 = arith.constant 0 : index
    %238 = vector.load %arg3[%c32, %c0_47] : memref<33x4xf32, #tpu.memory_space<vmem>>, vector<1x4xf32>
    %cst_48 = arith.constant dense<0.000000e+00> : vector<8x4xf32>
    %239 = tpu.matmul %236, %237, %cst_48 {dimension_numbers = #tpu.dot_dimension_numbers<[1], [0], [0], [1], [0, 0, 1, 1], [], []>} : vector<8x32xf32>, vector<32x4xf32>, vector<8x4xf32> -> vector<8x4xf32>
    %240 = vector.broadcast %238 : vector<1x4xf32> to vector<8x4xf32>
    %241 = arith.addf %239, %240 : vector<8x4xf32>
    %c0_49 = arith.constant 0 : index
    %c0_50 = arith.constant 0 : index
    %242 = vector.load %arg4[%c0_49, %c0_50] : memref<8x4xf32, #tpu.memory_space<vmem>>, vector<8x4xf32>
    tpu.vector_store %arg4[%c0_49, %c0_50], %241 {strides = array<i32>} : memref<8x4xf32, #tpu.memory_space<vmem>>, vector<8x4xf32>,
    return
  }
}

</mosaic_0001>

<llo_original>
// kernel: tpu_custom_call.1
$region0: #{tpu_custom_call.1}
  #allocation0 [shape = 'u32[]', space=smem, size = 0x4, offset = 0x4, fixed_abs, tag = 'smem constant byte address 0x4 - core index']
  #allocation1 [shape = 'u32[144,128]{1,0:T(1,128)}', space=vmem, size = 0x12000, scoped, tag = 'internal scratch']
  %s0 = inlined_call_operand.hbm [shape: f32[8,8,16], index: 0, kind: input, shape index: {}]
  %s1 = inlined_call_operand.hbm [shape: bf16[80,256], index: 1, kind: input, shape index: {}]
  %s2 = inlined_call_operand.vmem [shape: f32[1,256], index: 2, kind: input, shape index: {}]
  %s3 = inlined_call_operand.vmem [shape: f32[33,4], index: 3, kind: input, shape index: {}]
  %s4 = inlined_call_operand.vmem [shape: f32[8,4], index: 4, kind: output, shape index: {}]
  %s5 = sld [smem:[#allocation0]]
  $region34: #{tpu_custom_call.1} parent=0
    _
  %s7 = ssub.s32 1, %s5
  %s8 = scalar_select 0, %s7, %s5
  $region1: #{tpu_custom_call.1} parent=0
    #allocation2 [shape = 'u8[32768]{0}', space=vmem, size = 0x8000, scoped, tag = 'input window, operand 0, single buffered']
    #allocation3 [shape = 's32[1]{0}', space=sflag, size = 0x4, scoped, tag = 'scoped memory for tpu_custom_call.1']
    #allocation4 [shape = 'u8[40960]{0}', space=vmem, size = 0xa000, scoped, tag = 'input window, operand 1, single buffered']
    #allocation5 [shape = 's32[1]{0}', space=sflag, size = 0x4, scoped, tag = 'scoped memory for tpu_custom_call.1']
    %9 = vsyncpa [#allocation3], 0
    %10 = vsyncpa [#allocation5], 0
    // Predicated region
    $region2: #{tpu_custom_call.1} parent=1 // pred_check
      _
    $region3: #{tpu_custom_call.1} parent=1 // pred_check_branch
      %12 = sbr.rel (0) target = $region5
    $region4: #{tpu_custom_call.1} parent=1 // pred_region
      %s14 = ssub.s32 1024, 1024
      %15 = vsyncadd [#allocation3], %s14
      %s16 = sshll.u32 [#allocation2], 4
      %s17 = int_to_ptr.vmem [resolvable:$true] %s16
      %22 = dma.hbm_to_vmem [thread:$0]  %s0, 1024, %s17, [#allocation3], 128, 128, 8
    $region5: #{tpu_custom_call.1} parent=1 // pred_fallthru
      _
    // Predicated region
    $region6: #{tpu_custom_call.1} parent=1 // pred_check
      _
    $region7: #{tpu_custom_call.1} parent=1 // pred_check_branch
      %24 = sbr.rel (0) target = $region9
    $region8: #{tpu_custom_call.1} parent=1 // pred_region
      %s26 = ssub.s32 1280, 1280
      %27 = vsyncadd [#allocation5], %s26
      %s28 = sshll.u32 [#allocation4], 4
      %s29 = int_to_ptr.vmem [resolvable:$true] %s28
      %34 = dma.hbm_to_vmem [thread:$0]  %s1, 1280, %s29, [#allocation5], 128, 128, 8
    $region9: #{tpu_custom_call.1} parent=1 // pred_fallthru
      _
    // Predicated region
    $region10: #{tpu_custom_call.1} parent=1 // pred_check
      _
    $region11: #{tpu_custom_call.1} parent=1 // pred_check_branch
      %36 = sbr.rel (0) target = $region13
    $region12: #{tpu_custom_call.1} parent=1 // pred_region
      _
    $region13: #{tpu_custom_call.1} parent=1 // pred_fallthru
      _
    // Predicated region
    $region14: #{tpu_custom_call.1} parent=1 // pred_check
      _
    $region15: #{tpu_custom_call.1} parent=1 // pred_check_branch
      %38 = sbr.rel (0) target = $region17
    $region16: #{tpu_custom_call.1} parent=1 // pred_region
      _
    $region17: #{tpu_custom_call.1} parent=1 // pred_fallthru
      _
    // Predicated region
    $region18: #{tpu_custom_call.1} parent=1 // pred_check
      _
    $region19: #{tpu_custom_call.1} parent=1 // pred_check_branch
      %40 = sbr.rel (0) target = $region21
    $region20: #{tpu_custom_call.1} parent=1 // pred_region
      %41 = dma.done [#allocation3], 1024
    $region21: #{tpu_custom_call.1} parent=1 // pred_fallthru
      _
    // Predicated region
    $region22: #{tpu_custom_call.1} parent=1 // pred_check
      _
    $region23: #{tpu_custom_call.1} parent=1 // pred_check_branch
      %43 = sbr.rel (0) target = $region25
    $region24: #{tpu_custom_call.1} parent=1 // pred_region
      %44 = dma.done [#allocation5], 1280
    $region25: #{tpu_custom_call.1} parent=1 // pred_fallthru
      _
    %v46 = vld [vmem:[#allocation4] sm:$0xff]
    %v47 = vld [vmem:[#allocation4 + $0x8] sm:$0xff]
    %v48 = vld [vmem:[#allocation4 + $0x10] sm:$0xff]
    %v49 = vld [vmem:[#allocation4 + $0x18] sm:$0xff]
    %v50 = vld [vmem:[#allocation4 + $0x20] sm:$0xff]
    %v51 = vld [vmem:[#allocation4 + $0x28] sm:$0xff]
    %v52 = vld [vmem:[#allocation4 + $0x30] sm:$0xff]
    %v53 = vld [vmem:[#allocation4 + $0x38] sm:$0xff]
    %v54 = vld [vmem:[#allocation4 + $0x40] sm:$0xff]
    %v55 = vld [vmem:[#allocation4 + $0x48] sm:$0xff]
    %v56 = vld [vmem:[%s2] sm:$0x3]
    %v57 = vld [vmem:[#allocation2] sm:$0xff]
    %v58 = vld [vmem:[#allocation2 + $0x8] sm:$0xff]
    %v59 = vld [vmem:[#allocation2 + $0x10] sm:$0xff]
    %v60 = vld [vmem:[#allocation2 + $0x18] sm:$0xff]
    %v61 = vld [vmem:[#allocation2 + $0x20] sm:$0xff]
    %v62 = vld [vmem:[#allocation2 + $0x28] sm:$0xff]
    %v63 = vld [vmem:[#allocation2 + $0x30] sm:$0xff]
    %v64 = vld [vmem:[#allocation2 + $0x38] sm:$0xff]
    %v65 = vpack.c.bf16 %v58, %v57
    %v66 = vpack.c.bf16 %v60, %v59
    %v67 = vpack.c.bf16 %v62, %v61
    %v68 = vpack.c.bf16 %v64, %v63
    %v70 = vlaneseq
    %v71 = vshrl.u32 %v70, 7
    %v72 = vsub.s32 0, %v71
    %v73 = vrot.slane %v56, %v72
    %v74 = vlaneseq
    %v75 = vshrl.u32 %v74, 7
    %v76 = vsub.s32 1, %v75
    %v77 = vrot.slane %v56, %v76
    %v82 = vunpack.c.l.b16 %v54
    %v83 = vunpack.c.h.b16 %v54
    %v84 = vunpack.c.l.b16 %v55
    %v85 = vunpack.c.h.b16 %v55
    %v86 = vpack.c.b16 %v84, %v82
    %v87 = vpack.c.b16 %v85, %v83
    %vm90 = vcmask 130048
    %v92 = vsel %vm90, %v65, 0
    %v95 = vsel %vm90, %v66, 0
    %v98 = vsel %vm90, %v67, 0
    %v101 = vsel %vm90, %v68, 0
    %103 = vmatprep.subr.bf16.mxu0 %v87
    %104 = vmatpush1.bf16.msra.mxu0 %v86
    %105 = vmatprep.subr.bf16.mxu0 0
    %106 = vmatpush1.bf16.msra.mxu0 0
    %107 = vmatprep.subr.bf16.mxu0 0
    %108 = vmatpush1.bf16.msra.mxu0 0
    %109 = vmatprep.subr.bf16.mxu0 0
    %110 = vmatpush1.bf16.msra.mxu0 0
    %111 = vmatprep.subr.bf16.mxu0 0
    %112 = vmatpush1.bf16.msra.mxu0 0
    %113 = vmatprep.subr.bf16.mxu0 0
    %114 = vmatpush1.bf16.msra.mxu0 0
    %115 = vmatprep.subr.bf16.mxu0 0
    %116 = vmatpush1.bf16.msra.mxu0 0
    %117 = vmatprep.subr.bf16.mxu0 0
    %118 = vmatpush1.bf16.msra.mxu0 0
    %119 = vmatprep.subr.bf16.mxu0 0
    %120 = vmatpush1.bf16.msra.mxu0 0
    %121 = vmatprep.subr.bf16.mxu0 0
    %122 = vmatpush1.bf16.msra.mxu0 0
    %123 = vmatprep.subr.bf16.mxu0 0
    %124 = vmatpush1.bf16.msra.mxu0 0
    %125 = vmatprep.subr.bf16.mxu0 0
    %126 = vmatpush1.bf16.msra.mxu0 0
    %127 = vmatprep.subr.bf16.mxu0 0
    %128 = vmatpush1.bf16.msra.mxu0 0
    %129 = vmatprep.subr.bf16.mxu0 0
    %130 = vmatpush1.bf16.msra.mxu0 0
    %131 = vmatprep.subr.bf16.mxu0 0
    %132 = vmatpush1.bf16.msra.mxu0 0
    %133 = vmatprep.subr.bf16.mxu0 0
    %134 = vmatpush1.bf16.msra.mxu0 0
    %135 = vmatprep.mubr.bf16.mxu0 0
    %136 = vmatmul.mubr.bf16.gmra.mrb[0].mxu0 %v92
    %v137 = vpop.f32.mrb[0].mxu0
    %v138 = vadd.f32 %v73, %v137
    %v139 = vpop.f32.mrb[0].mxu0
    %v140 = vadd.f32 %v77, %v139
    %v141 = vpop.f32.mrb[0].mxu0
    %v142 = vadd.f32 %v73, %v141
    %v143 = vpop.f32.mrb[0].mxu0
    %v144 = vadd.f32 %v77, %v143
    %145 = vmatprep.mubr.bf16.mxu0 0
    %146 = vmatmul.mubr.bf16.gmra.mrb[0].mxu0 %v95
    %v147 = vpop.f32.mrb[0].mxu0
    %v148 = vadd.f32 %v73, %v147
    %v149 = vpop.f32.mrb[0].mxu0
    %v150 = vadd.f32 %v77, %v149
    %v151 = vpop.f32.mrb[0].mxu0
    %v152 = vadd.f32 %v73, %v151
    %v153 = vpop.f32.mrb[0].mxu0
    %v154 = vadd.f32 %v77, %v153
    %155 = vmatprep.mubr.bf16.mxu0 0
    %156 = vmatmul.mubr.bf16.gmra.mrb[0].mxu0 %v98
    %v157 = vpop.f32.mrb[0].mxu0
    %v158 = vadd.f32 %v73, %v157
    %v159 = vpop.f32.mrb[0].mxu0
    %v160 = vadd.f32 %v77, %v159
    %v161 = vpop.f32.mrb[0].mxu0
    %v162 = vadd.f32 %v73, %v161
    %v163 = vpop.f32.mrb[0].mxu0
    %v164 = vadd.f32 %v77, %v163
    %165 = vmatprep.mubr.bf16.mxu0 0
    %166 = vmatmul.mubr.bf16.gmra.mrb[0].mxu0 %v101
    %v167 = vpop.f32.mrb[0].mxu0
    %v168 = vadd.f32 %v73, %v167
    %v169 = vpop.f32.mrb[0].mxu0
    %v170 = vadd.f32 %v77, %v169
    %v171 = vpop.f32.mrb[0].mxu0
    %v172 = vadd.f32 %v73, %v171
    %v173 = vpop.f32.mrb[0].mxu0
    %v174 = vadd.f32 %v77, %v173
    %175 = vdwg.mxu0
    %v176 = vlaneseq
    %v177 = vand.u32 %v176, 127
    %v178 = vxor.u32 %v138, 2147483648
    %v179 = vxor.u32 %v140, 2147483648
    %v180 = vmul.f32 %v178, 1.442695
    %v181 = vpow.pop %v180
    %v182 = vmul.f32 %v179, 1.442695
    %v183 = vpow.pop %v182
    %v184 = vadd.f32 %v181, 1.0
    %v185 = vadd.f32 %v183, 1.0
    %v186 = vrcp.pop %v184
    %v187 = vmul.f32 1.0, %v186
    %v188 = vrcp.pop %v185
    %v189 = vmul.f32 1.0, %v188
    %v190 = vmul.f32 %v189, 2.0
    %v191 = vsub.f32 %v190, 1.0
    %v192 = vmul.f32 %v187, 0.0
    %v193 = vmul.f32 %v187, %v191
    %195 = vrot.lane.b32.xlu0 %v193, 64
    %v196 = vpop.permute.xlu0 %195
    %v198 = vadd.f32 %v192, %v196
    %v199 = vtanh.pop %v198
    %v200 = vmul.f32 %v189, %v199
    %vm201 = vcmp.ge.s32.totalorder %v177, 0
    %vm202 = vcmp.lt.s32.totalorder %v177, 32
    %vm203 = vmand %vm201, %vm202
    %v204 = vsel %vm203, 1, 0
    %vm205 = vcmp.eq.s32.totalorder %v204, 1
    %207 = vrot.lane.b32.xlu0 %v198, 64
    %v208 = vpop.permute.xlu0 %207
    %v210 = vsel %vm205, %v208, 0.0
    %212 = vrot.lane.b32.xlu0 %v200, 64
    %v213 = vpop.permute.xlu0 %212
    %v215 = vsel %vm205, %v213, 0.0
    %v216 = vpack.c.bf16 %v215, %v215
    %v225 = vunpack.c.l.b16 %v46
    %v226 = vunpack.c.h.b16 %v46
    %v227 = vunpack.c.l.b16 %v47
    %v228 = vunpack.c.h.b16 %v47
    %v229 = vunpack.c.l.b16 %v48
    %v230 = vunpack.c.h.b16 %v48
    %v231 = vunpack.c.l.b16 %v49
    %v232 = vunpack.c.h.b16 %v49
    %v233 = vunpack.c.l.b16 %v50
    %v234 = vunpack.c.h.b16 %v50
    %v235 = vunpack.c.l.b16 %v51
    %v236 = vunpack.c.h.b16 %v51
    %v237 = vunpack.c.l.b16 %v52
    %v238 = vunpack.c.h.b16 %v52
    %v239 = vunpack.c.l.b16 %v53
    %v240 = vunpack.c.h.b16 %v53
    %v241 = vpack.c.b16 %v227, %v225
    %v242 = vpack.c.b16 %v228, %v226
    %v243 = vpack.c.b16 %v231, %v229
    %v244 = vpack.c.b16 %v232, %v230
    %v245 = vpack.c.b16 %v235, %v233
    %v246 = vpack.c.b16 %v236, %v234
    %v247 = vpack.c.b16 %v239, %v237
    %v248 = vpack.c.b16 %v240, %v238
    %vm257 = vcmask 523264
    %v259 = vsel %vm257, %v216, 0
    %261 = vmatprep.subr.bf16.mxu0 %v242
    %262 = vmatpush1.bf16.msra.mxu0 %v241
    %263 = vmatprep.subr.bf16.mxu0 %v244
    %264 = vmatpush1.bf16.msra.mxu0 %v243
    %265 = vmatprep.subr.bf16.mxu0 %v246
    %266 = vmatpush1.bf16.msra.mxu0 %v245
    %267 = vmatprep.subr.bf16.mxu0 %v248
    %268 = vmatpush1.bf16.msra.mxu0 %v247
    %269 = vmatprep.subr.bf16.mxu0 0
    %270 = vmatpush1.bf16.msra.mxu0 0
    %271 = vmatprep.subr.bf16.mxu0 0
    %272 = vmatpush1.bf16.msra.mxu0 0
    %273 = vmatprep.subr.bf16.mxu0 0
    %274 = vmatpush1.bf16.msra.mxu0 0
    %275 = vmatprep.subr.bf16.mxu0 0
    %276 = vmatpush1.bf16.msra.mxu0 0
    %277 = vmatprep.subr.bf16.mxu0 0
    %278 = vmatpush1.bf16.msra.mxu0 0
    %279 = vmatprep.subr.bf16.mxu0 0
    %280 = vmatpush1.bf16.msra.mxu0 0
    %281 = vmatprep.subr.bf16.mxu0 0
    %282 = vmatpush1.bf16.msra.mxu0 0
    %283 = vmatprep.subr.bf16.mxu0 0
    %284 = vmatpush1.bf16.msra.mxu0 0
    %285 = vmatprep.subr.bf16.mxu0 0
    %286 = vmatpush1.bf16.msra.mxu0 0
    %287 = vmatprep.subr.bf16.mxu0 0
    %288 = vmatpush1.bf16.msra.mxu0 0
    %289 = vmatprep.subr.bf16.mxu0 0
    %290 = vmatpush1.bf16.msra.mxu0 0
    %291 = vmatprep.subr.bf16.mxu0 0
    %292 = vmatpush1.bf16.msra.mxu0 0
    %293 = vmatprep.mubr.bf16.mxu0 0
    %294 = vmatmul.mubr.bf16.gmra.mrb[0].mxu0 %v259
    %v295 = vpop.f32.mrb[0].mxu0
    %v296 = vadd.f32 %v142, %v295
    %v297 = vpop.f32.mrb[0].mxu0
    %v298 = vadd.f32 %v144, %v297
    %v299 = vpop.f32.mrb[0].mxu0
    %v300 = vpop.f32.mrb[0].mxu0
    %301 = vdwg.mxu0
    %v302 = vxor.u32 %v296, 2147483648
    %v303 = vxor.u32 %v298, 2147483648
    %v304 = vmul.f32 %v302, 1.442695
    %v305 = vpow.pop %v304
    %v306 = vmul.f32 %v303, 1.442695
    %v307 = vpow.pop %v306
    %v308 = vadd.f32 %v305, 1.0
    %v309 = vadd.f32 %v307, 1.0
    %v310 = vrcp.pop %v308
    %v311 = vmul.f32 1.0, %v310
    %v312 = vrcp.pop %v309
    %v313 = vmul.f32 1.0, %v312
    %v314 = vmul.f32 %v313, 2.0
    %v315 = vsub.f32 %v314, 1.0
    %317 = vrot.lane.b32.xlu0 %v210, 64
    %v318 = vpop.permute.xlu0 %317
    %v320 = vmul.f32 %v311, %v318
    %v321 = vmul.f32 %v311, %v315
    %323 = vrot.lane.b32.xlu0 %v321, 64
    %v324 = vpop.permute.xlu0 %323
    %v326 = vadd.f32 %v320, %v324
    %v327 = vtanh.pop %v326
    %v328 = vmul.f32 %v313, %v327
    %v329 = vpack.c.bf16 %v328, %v328
    %331 = vrot.lane.b32.xlu0 %v329, 64
    %v332 = vpop.permute.xlu0 %331
    %v334 = vsel %vm257, %v332, 0
    %336 = vmatprep.subr.bf16.mxu0 %v242
    %337 = vmatpush1.bf16.msra.mxu0 %v241
    %338 = vmatprep.subr.bf16.mxu0 %v244
    %339 = vmatpush1.bf16.msra.mxu0 %v243
    %340 = vmatprep.subr.bf16.mxu0 %v246
    %341 = vmatpush1.bf16.msra.mxu0 %v245
    %342 = vmatprep.subr.bf16.mxu0 %v248
    %343 = vmatpush1.bf16.msra.mxu0 %v247
    %344 = vmatprep.subr.bf16.mxu0 0
    %345 = vmatpush1.bf16.msra.mxu0 0
    %346 = vmatprep.subr.bf16.mxu0 0
    %347 = vmatpush1.bf16.msra.mxu0 0
    %348 = vmatprep.subr.bf16.mxu0 0
    %349 = vmatpush1.bf16.msra.mxu0 0
    %350 = vmatprep.subr.bf16.mxu0 0
    %351 = vmatpush1.bf16.msra.mxu0 0
    %352 = vmatprep.subr.bf16.mxu0 0
    %353 = vmatpush1.bf16.msra.mxu0 0
    %354 = vmatprep.subr.bf16.mxu0 0
    %355 = vmatpush1.bf16.msra.mxu0 0
    %356 = vmatprep.subr.bf16.mxu0 0
    %357 = vmatpush1.bf16.msra.mxu0 0
    %358 = vmatprep.subr.bf16.mxu0 0
    %359 = vmatpush1.bf16.msra.mxu0 0
    %360 = vmatprep.subr.bf16.mxu0 0
    %361 = vmatpush1.bf16.msra.mxu0 0
    %362 = vmatprep.subr.bf16.mxu0 0
    %363 = vmatpush1.bf16.msra.mxu0 0
    %364 = vmatprep.subr.bf16.mxu0 0
    %365 = vmatpush1.bf16.msra.mxu0 0
    %366 = vmatprep.subr.bf16.mxu0 0
    %367 = vmatpush1.bf16.msra.mxu0 0
    %368 = vmatprep.mubr.bf16.mxu0 0
    %369 = vmatmul.mubr.bf16.gmra.mrb[0].mxu0 %v334
    %v370 = vpop.f32.mrb[0].mxu0
    %v371 = vadd.f32 %v148, %v370
    %v372 = vpop.f32.mrb[0].mxu0
    %v373 = vadd.f32 %v150, %v372
    %v374 = vpop.f32.mrb[0].mxu0
    %v375 = vpop.f32.mrb[0].mxu0
    %376 = vdwg.mxu0
    %v377 = vxor.u32 %v371, 2147483648
    %v378 = vxor.u32 %v373, 2147483648
    %v379 = vmul.f32 %v377, 1.442695
    %v380 = vpow.pop %v379
    %v381 = vmul.f32 %v378, 1.442695
    %v382 = vpow.pop %v381
    %v383 = vadd.f32 %v380, 1.0
    %v384 = vadd.f32 %v382, 1.0
    %v385 = vrcp.pop %v383
    %v386 = vmul.f32 1.0, %v385
    %v387 = vrcp.pop %v384
    %v388 = vmul.f32 1.0, %v387
    %v389 = vmul.f32 %v388, 2.0
    %v390 = vsub.f32 %v389, 1.0
    %v391 = vmul.f32 %v386, %v326
    %v392 = vmul.f32 %v386, %v390
    %394 = vrot.lane.b32.xlu0 %v392, 64
    %v395 = vpop.permute.xlu0 %394
    %v397 = vadd.f32 %v391, %v395
    %v398 = vtanh.pop %v397
    %v399 = vmul.f32 %v388, %v398
    %v400 = vpack.c.bf16 %v399, %v399
    %402 = vrot.lane.b32.xlu0 %v400, 64
    %v403 = vpop.permute.xlu0 %402
    %v405 = vsel %vm257, %v403, 0
    %407 = vmatprep.subr.bf16.mxu0 %v242
    %408 = vmatpush1.bf16.msra.mxu0 %v241
    %409 = vmatprep.subr.bf16.mxu0 %v244
    %410 = vmatpush1.bf16.msra.mxu0 %v243
    %411 = vmatprep.subr.bf16.mxu0 %v246
    %412 = vmatpush1.bf16.msra.mxu0 %v245
    %413 = vmatprep.subr.bf16.mxu0 %v248
    %414 = vmatpush1.bf16.msra.mxu0 %v247
    %415 = vmatprep.subr.bf16.mxu0 0
    %416 = vmatpush1.bf16.msra.mxu0 0
    %417 = vmatprep.subr.bf16.mxu0 0
    %418 = vmatpush1.bf16.msra.mxu0 0
    %419 = vmatprep.subr.bf16.mxu0 0
    %420 = vmatpush1.bf16.msra.mxu0 0
    %421 = vmatprep.subr.bf16.mxu0 0
    %422 = vmatpush1.bf16.msra.mxu0 0
    %423 = vmatprep.subr.bf16.mxu0 0
    %424 = vmatpush1.bf16.msra.mxu0 0
    %425 = vmatprep.subr.bf16.mxu0 0
    %426 = vmatpush1.bf16.msra.mxu0 0
    %427 = vmatprep.subr.bf16.mxu0 0
    %428 = vmatpush1.bf16.msra.mxu0 0
    %429 = vmatprep.subr.bf16.mxu0 0
    %430 = vmatpush1.bf16.msra.mxu0 0
    %431 = vmatprep.subr.bf16.mxu0 0
    %432 = vmatpush1.bf16.msra.mxu0 0
    %433 = vmatprep.subr.bf16.mxu0 0
    %434 = vmatpush1.bf16.msra.mxu0 0
    %435 = vmatprep.subr.bf16.mxu0 0
    %436 = vmatpush1.bf16.msra.mxu0 0
    %437 = vmatprep.subr.bf16.mxu0 0
    %438 = vmatpush1.bf16.msra.mxu0 0
    %439 = vmatprep.mubr.bf16.mxu0 0
    %440 = vmatmul.mubr.bf16.gmra.mrb[0].mxu0 %v405
    %v441 = vpop.f32.mrb[0].mxu0
    %v442 = vadd.f32 %v152, %v441
    %v443 = vpop.f32.mrb[0].mxu0
    %v444 = vadd.f32 %v154, %v443
    %v445 = vpop.f32.mrb[0].mxu0
    %v446 = vpop.f32.mrb[0].mxu0
    %447 = vdwg.mxu0
    %v448 = vxor.u32 %v442, 2147483648
    %v449 = vxor.u32 %v444, 2147483648
    %v450 = vmul.f32 %v448, 1.442695
    %v451 = vpow.pop %v450
    %v452 = vmul.f32 %v449, 1.442695
    %v453 = vpow.pop %v452
    %v454 = vadd.f32 %v451, 1.0
    %v455 = vadd.f32 %v453, 1.0
    %v456 = vrcp.pop %v454
    %v457 = vmul.f32 1.0, %v456
    %v458 = vrcp.pop %v455
    %v459 = vmul.f32 1.0, %v458
    %v460 = vmul.f32 %v459, 2.0
    %v461 = vsub.f32 %v460, 1.0
    %v462 = vmul.f32 %v457, %v397
    %v463 = vmul.f32 %v457, %v461
    %465 = vrot.lane.b32.xlu0 %v463, 64
    %v466 = vpop.permute.xlu0 %465
    %v468 = vadd.f32 %v462, %v466
    %v469 = vtanh.pop %v468
    %v470 = vmul.f32 %v459, %v469
    %v471 = vpack.c.bf16 %v470, %v470
    %473 = vrot.lane.b32.xlu0 %v471, 64
    %v474 = vpop.permute.xlu0 %473
    %v476 = vsel %vm257, %v474, 0
    %478 = vmatprep.subr.bf16.mxu0 %v242
    %479 = vmatpush1.bf16.msra.mxu0 %v241
    %480 = vmatprep.subr.bf16.mxu0 %v244
    %481 = vmatpush1.bf16.msra.mxu0 %v243
    %482 = vmatprep.subr.bf16.mxu0 %v246
    %483 = vmatpush1.bf16.msra.mxu0 %v245
    %484 = vmatprep.subr.bf16.mxu0 %v248
    %485 = vmatpush1.bf16.msra.mxu0 %v247
    %486 = vmatprep.subr.bf16.mxu0 0
    %487 = vmatpush1.bf16.msra.mxu0 0
    %488 = vmatprep.subr.bf16.mxu0 0
    %489 = vmatpush1.bf16.msra.mxu0 0
    %490 = vmatprep.subr.bf16.mxu0 0
    %491 = vmatpush1.bf16.msra.mxu0 0
    %492 = vmatprep.subr.bf16.mxu0 0
    %493 = vmatpush1.bf16.msra.mxu0 0
    %494 = vmatprep.subr.bf16.mxu0 0
    %495 = vmatpush1.bf16.msra.mxu0 0
    %496 = vmatprep.subr.bf16.mxu0 0
    %497 = vmatpush1.bf16.msra.mxu0 0
    %498 = vmatprep.subr.bf16.mxu0 0
    %499 = vmatpush1.bf16.msra.mxu0 0
    %500 = vmatprep.subr.bf16.mxu0 0
    %501 = vmatpush1.bf16.msra.mxu0 0
    %502 = vmatprep.subr.bf16.mxu0 0
    %503 = vmatpush1.bf16.msra.mxu0 0
    %504 = vmatprep.subr.bf16.mxu0 0
    %505 = vmatpush1.bf16.msra.mxu0 0
    %506 = vmatprep.subr.bf16.mxu0 0
    %507 = vmatpush1.bf16.msra.mxu0 0
    %508 = vmatprep.subr.bf16.mxu0 0
    %509 = vmatpush1.bf16.msra.mxu0 0
    %510 = vmatprep.mubr.bf16.mxu0 0
    %511 = vmatmul.mubr.bf16.gmra.mrb[0].mxu0 %v476
    %v512 = vpop.f32.mrb[0].mxu0
    %v513 = vadd.f32 %v158, %v512
    %v514 = vpop.f32.mrb[0].mxu0
    %v515 = vadd.f32 %v160, %v514
    %v516 = vpop.f32.mrb[0].mxu0
    %v517 = vpop.f32.mrb[0].mxu0
    %518 = vdwg.mxu0
    %v519 = vxor.u32 %v513, 2147483648
    %v520 = vxor.u32 %v515, 2147483648
    %v521 = vmul.f32 %v519, 1.442695
    %v522 = vpow.pop %v521
    %v523 = vmul.f32 %v520, 1.442695
    %v524 = vpow.pop %v523
    %v525 = vadd.f32 %v522, 1.0
    %v526 = vadd.f32 %v524, 1.0
    %v527 = vrcp.pop %v525
    %v528 = vmul.f32 1.0, %v527
    %v529 = vrcp.pop %v526
    %v530 = vmul.f32 1.0, %v529
    %v531 = vmul.f32 %v530, 2.0
    %v532 = vsub.f32 %v531, 1.0
    %v533 = vmul.f32 %v528, %v468
    %v534 = vmul.f32 %v528, %v532
    %536 = vrot.lane.b32.xlu0 %v534, 64
    %v537 = vpop.permute.xlu0 %536
    %v539 = vadd.f32 %v533, %v537
    %v540 = vtanh.pop %v539
    %v541 = vmul.f32 %v530, %v540
    %v542 = vpack.c.bf16 %v541, %v541
    %544 = vrot.lane.b32.xlu0 %v542, 64
    %v545 = vpop.permute.xlu0 %544
    %v547 = vsel %vm257, %v545, 0
    %549 = vmatprep.subr.bf16.mxu0 %v242
    %550 = vmatpush1.bf16.msra.mxu0 %v241
    %551 = vmatprep.subr.bf16.mxu0 %v244
    %552 = vmatpush1.bf16.msra.mxu0 %v243
    %553 = vmatprep.subr.bf16.mxu0 %v246
    %554 = vmatpush1.bf16.msra.mxu0 %v245
    %555 = vmatprep.subr.bf16.mxu0 %v248
    %556 = vmatpush1.bf16.msra.mxu0 %v247
    %557 = vmatprep.subr.bf16.mxu0 0
    %558 = vmatpush1.bf16.msra.mxu0 0
    %559 = vmatprep.subr.bf16.mxu0 0
    %560 = vmatpush1.bf16.msra.mxu0 0
    %561 = vmatprep.subr.bf16.mxu0 0
    %562 = vmatpush1.bf16.msra.mxu0 0
    %563 = vmatprep.subr.bf16.mxu0 0
    %564 = vmatpush1.bf16.msra.mxu0 0
    %565 = vmatprep.subr.bf16.mxu0 0
    %566 = vmatpush1.bf16.msra.mxu0 0
    %567 = vmatprep.subr.bf16.mxu0 0
    %568 = vmatpush1.bf16.msra.mxu0 0
    %569 = vmatprep.subr.bf16.mxu0 0
    %570 = vmatpush1.bf16.msra.mxu0 0
    %571 = vmatprep.subr.bf16.mxu0 0
    %572 = vmatpush1.bf16.msra.mxu0 0
    %573 = vmatprep.subr.bf16.mxu0 0
    %574 = vmatpush1.bf16.msra.mxu0 0
    %575 = vmatprep.subr.bf16.mxu0 0
    %576 = vmatpush1.bf16.msra.mxu0 0
    %577 = vmatprep.subr.bf16.mxu0 0
    %578 = vmatpush1.bf16.msra.mxu0 0
    %579 = vmatprep.subr.bf16.mxu0 0
    %580 = vmatpush1.bf16.msra.mxu0 0
    %581 = vmatprep.mubr.bf16.mxu0 0
    %582 = vmatmul.mubr.bf16.gmra.mrb[0].mxu0 %v547
    %v583 = vpop.f32.mrb[0].mxu0
    %v584 = vadd.f32 %v162, %v583
    %v585 = vpop.f32.mrb[0].mxu0
    %v586 = vadd.f32 %v164, %v585
    %v587 = vpop.f32.mrb[0].mxu0
    %v588 = vpop.f32.mrb[0].mxu0
    %589 = vdwg.mxu0
    %v590 = vxor.u32 %v584, 2147483648
    %v591 = vxor.u32 %v586, 2147483648
    %v592 = vmul.f32 %v590, 1.442695
    %v593 = vpow.pop %v592
    %v594 = vmul.f32 %v591, 1.442695
    %v595 = vpow.pop %v594
    %v596 = vadd.f32 %v593, 1.0
    %v597 = vadd.f32 %v595, 1.0
    %v598 = vrcp.pop %v596
    %v599 = vmul.f32 1.0, %v598
    %v600 = vrcp.pop %v597
    %v601 = vmul.f32 1.0, %v600
    %v602 = vmul.f32 %v601, 2.0
    %v603 = vsub.f32 %v602, 1.0
    %v604 = vmul.f32 %v599, %v539
    %v605 = vmul.f32 %v599, %v603
    %607 = vrot.lane.b32.xlu0 %v605, 64
    %v608 = vpop.permute.xlu0 %607
    %v610 = vadd.f32 %v604, %v608
    %v611 = vtanh.pop %v610
    %v612 = vmul.f32 %v601, %v611
    %v613 = vpack.c.bf16 %v612, %v612
    %615 = vrot.lane.b32.xlu0 %v613, 64
    %v616 = vpop.permute.xlu0 %615
    %v618 = vsel %vm257, %v616, 0
    %620 = vmatprep.subr.bf16.mxu0 %v242
    %621 = vmatpush1.bf16.msra.mxu0 %v241
    %622 = vmatprep.subr.bf16.mxu0 %v244
    %623 = vmatpush1.bf16.msra.mxu0 %v243
    %624 = vmatprep.subr.bf16.mxu0 %v246
    %625 = vmatpush1.bf16.msra.mxu0 %v245
    %626 = vmatprep.subr.bf16.mxu0 %v248
    %627 = vmatpush1.bf16.msra.mxu0 %v247
    %628 = vmatprep.subr.bf16.mxu0 0
    %629 = vmatpush1.bf16.msra.mxu0 0
    %630 = vmatprep.subr.bf16.mxu0 0
    %631 = vmatpush1.bf16.msra.mxu0 0
    %632 = vmatprep.subr.bf16.mxu0 0
    %633 = vmatpush1.bf16.msra.mxu0 0
    %634 = vmatprep.subr.bf16.mxu0 0
    %635 = vmatpush1.bf16.msra.mxu0 0
    %636 = vmatprep.subr.bf16.mxu0 0
    %637 = vmatpush1.bf16.msra.mxu0 0
    %638 = vmatprep.subr.bf16.mxu0 0
    %639 = vmatpush1.bf16.msra.mxu0 0
    %640 = vmatprep.subr.bf16.mxu0 0
    %641 = vmatpush1.bf16.msra.mxu0 0
    %642 = vmatprep.subr.bf16.mxu0 0
    %643 = vmatpush1.bf16.msra.mxu0 0
    %644 = vmatprep.subr.bf16.mxu0 0
    %645 = vmatpush1.bf16.msra.mxu0 0
    %646 = vmatprep.subr.bf16.mxu0 0
    %647 = vmatpush1.bf16.msra.mxu0 0
    %648 = vmatprep.subr.bf16.mxu0 0
    %649 = vmatpush1.bf16.msra.mxu0 0
    %650 = vmatprep.subr.bf16.mxu0 0
    %651 = vmatpush1.bf16.msra.mxu0 0
    %652 = vmatprep.mubr.bf16.mxu0 0
    %653 = vmatmul.mubr.bf16.gmra.mrb[0].mxu0 %v618
    %v654 = vpop.f32.mrb[0].mxu0
    %v655 = vadd.f32 %v168, %v654
    %v656 = vpop.f32.mrb[0].mxu0
    %v657 = vadd.f32 %v170, %v656
    %v658 = vpop.f32.mrb[0].mxu0
    %v659 = vpop.f32.mrb[0].mxu0
    %660 = vdwg.mxu0
    %v661 = vxor.u32 %v655, 2147483648
    %v662 = vxor.u32 %v657, 2147483648
    %v663 = vmul.f32 %v661, 1.442695
    %v664 = vpow.pop %v663
    %v665 = vmul.f32 %v662, 1.442695
    %v666 = vpow.pop %v665
    %v667 = vadd.f32 %v664, 1.0
    %v668 = vadd.f32 %v666, 1.0
    %v669 = vrcp.pop %v667
    %v670 = vmul.f32 1.0, %v669
    %v671 = vrcp.pop %v668
    %v672 = vmul.f32 1.0, %v671
    %v673 = vmul.f32 %v672, 2.0
    %v674 = vsub.f32 %v673, 1.0
    %v675 = vmul.f32 %v670, %v610
    %v676 = vmul.f32 %v670, %v674
    %678 = vrot.lane.b32.xlu0 %v676, 64
    %v679 = vpop.permute.xlu0 %678
    %v681 = vadd.f32 %v675, %v679
    %v682 = vtanh.pop %v681
    %v683 = vmul.f32 %v672, %v682
    %v684 = vpack.c.bf16 %v683, %v683
    %686 = vrot.lane.b32.xlu0 %v684, 64
    %v687 = vpop.permute.xlu0 %686
    %v689 = vsel %vm257, %v687, 0
    %691 = vmatprep.subr.bf16.mxu0 %v242
    %692 = vmatpush1.bf16.msra.mxu0 %v241
    %693 = vmatprep.subr.bf16.mxu0 %v244
    %694 = vmatpush1.bf16.msra.mxu0 %v243
    %695 = vmatprep.subr.bf16.mxu0 %v246
    %696 = vmatpush1.bf16.msra.mxu0 %v245
    %697 = vmatprep.subr.bf16.mxu0 %v248
    %698 = vmatpush1.bf16.msra.mxu0 %v247
    %699 = vmatprep.subr.bf16.mxu0 0
    %700 = vmatpush1.bf16.msra.mxu0 0
    %701 = vmatprep.subr.bf16.mxu0 0
    %702 = vmatpush1.bf16.msra.mxu0 0
    %703 = vmatprep.subr.bf16.mxu0 0
    %704 = vmatpush1.bf16.msra.mxu0 0
    %705 = vmatprep.subr.bf16.mxu0 0
    %706 = vmatpush1.bf16.msra.mxu0 0
    %707 = vmatprep.subr.bf16.mxu0 0
    %708 = vmatpush1.bf16.msra.mxu0 0
    %709 = vmatprep.subr.bf16.mxu0 0
    %710 = vmatpush1.bf16.msra.mxu0 0
    %711 = vmatprep.subr.bf16.mxu0 0
    %712 = vmatpush1.bf16.msra.mxu0 0
    %713 = vmatprep.subr.bf16.mxu0 0
    %714 = vmatpush1.bf16.msra.mxu0 0
    %715 = vmatprep.subr.bf16.mxu0 0
    %716 = vmatpush1.bf16.msra.mxu0 0
    %717 = vmatprep.subr.bf16.mxu0 0
    %718 = vmatpush1.bf16.msra.mxu0 0
    %719 = vmatprep.subr.bf16.mxu0 0
    %720 = vmatpush1.bf16.msra.mxu0 0
    %721 = vmatprep.subr.bf16.mxu0 0
    %722 = vmatpush1.bf16.msra.mxu0 0
    %723 = vmatprep.mubr.bf16.mxu0 0
    %724 = vmatmul.mubr.bf16.gmra.mrb[0].mxu0 %v689
    %v725 = vpop.f32.mrb[0].mxu0
    %v726 = vadd.f32 %v172, %v725
    %v727 = vpop.f32.mrb[0].mxu0
    %v728 = vadd.f32 %v174, %v727
    %v729 = vpop.f32.mrb[0].mxu0
    %v730 = vpop.f32.mrb[0].mxu0
    %731 = vdwg.mxu0
    %v732 = vxor.u32 %v726, 2147483648
    %v733 = vxor.u32 %v728, 2147483648
    %v734 = vmul.f32 %v732, 1.442695
    %v735 = vpow.pop %v734
    %v736 = vmul.f32 %v733, 1.442695
    %v737 = vpow.pop %v736
    %v738 = vadd.f32 %v735, 1.0
    %v739 = vadd.f32 %v737, 1.0
    %v740 = vrcp.pop %v738
    %v741 = vmul.f32 1.0, %v740
    %v742 = vrcp.pop %v739
    %v743 = vmul.f32 1.0, %v742
    %v744 = vmul.f32 %v743, 2.0
    %v745 = vsub.f32 %v744, 1.0
    %v746 = vmul.f32 %v741, %v681
    %v747 = vmul.f32 %v741, %v745
    %749 = vrot.lane.b32.xlu0 %v747, 64
    %v750 = vpop.permute.xlu0 %749
    %v752 = vadd.f32 %v746, %v750
    %v753 = vtanh.pop %v752
    %v754 = vmul.f32 %v743, %v753
    %v755 = vpack.c.bf16 %v754, %v754
    %757 = vrot.lane.b32.xlu0 %v755, 64
    %v758 = vpop.permute.xlu0 %757
    %v760 = vsel %vm257, %v758, 0
    %762 = vmatprep.subr.bf16.mxu0 %v242
    %763 = vmatpush1.bf16.msra.mxu0 %v241
    %764 = vmatprep.subr.bf16.mxu0 %v244
    %765 = vmatpush1.bf16.msra.mxu0 %v243
    %766 = vmatprep.subr.bf16.mxu0 %v246
    %767 = vmatpush1.bf16.msra.mxu0 %v245
    %768 = vmatprep.subr.bf16.mxu0 %v248
    %769 = vmatpush1.bf16.msra.mxu0 %v247
    %770 = vmatprep.subr.bf16.mxu0 0
    %771 = vmatpush1.bf16.msra.mxu0 0
    %772 = vmatprep.subr.bf16.mxu0 0
    %773 = vmatpush1.bf16.msra.mxu0 0
    %774 = vmatprep.subr.bf16.mxu0 0
    %775 = vmatpush1.bf16.msra.mxu0 0
    %776 = vmatprep.subr.bf16.mxu0 0
    %777 = vmatpush1.bf16.msra.mxu0 0
    %778 = vmatprep.subr.bf16.mxu0 0
    %779 = vmatpush1.bf16.msra.mxu0 0
    %780 = vmatprep.subr.bf16.mxu0 0
    %781 = vmatpush1.bf16.msra.mxu0 0
    %782 = vmatprep.subr.bf16.mxu0 0
    %783 = vmatpush1.bf16.msra.mxu0 0
    %784 = vmatprep.subr.bf16.mxu0 0
    %785 = vmatpush1.bf16.msra.mxu0 0
    %786 = vmatprep.subr.bf16.mxu0 0
    %787 = vmatpush1.bf16.msra.mxu0 0
    %788 = vmatprep.subr.bf16.mxu0 0
    %789 = vmatpush1.bf16.msra.mxu0 0
    %790 = vmatprep.subr.bf16.mxu0 0
    %791 = vmatpush1.bf16.msra.mxu0 0
    %792 = vmatprep.subr.bf16.mxu0 0
    %793 = vmatpush1.bf16.msra.mxu0 0
    %794 = vmatprep.mubr.bf16.mxu0 0
    %795 = vmatmul.mubr.bf16.gmra.mrb[0].mxu0 %v760
    %v796 = vpop.f32.mrb[0].mxu0
    %v797 = vadd.f32 %v172, %v796
    %v798 = vpop.f32.mrb[0].mxu0
    %v799 = vadd.f32 %v174, %v798
    %v800 = vpop.f32.mrb[0].mxu0
    %v801 = vpop.f32.mrb[0].mxu0
    %802 = vdwg.mxu0
    %v803 = vxor.u32 %v797, 2147483648
    %v804 = vxor.u32 %v799, 2147483648
    %v805 = vmul.f32 %v803, 1.442695
    %v806 = vpow.pop %v805
    %v807 = vmul.f32 %v804, 1.442695
    %v808 = vpow.pop %v807
    %v809 = vadd.f32 %v806, 1.0
    %v810 = vadd.f32 %v808, 1.0
    %v811 = vrcp.pop %v809
    %v812 = vmul.f32 1.0, %v811
    %v813 = vrcp.pop %v810
    %v814 = vmul.f32 1.0, %v813
    %v815 = vmul.f32 %v814, 2.0
    %v816 = vsub.f32 %v815, 1.0
    %v817 = vmul.f32 %v812, %v752
    %v818 = vmul.f32 %v812, %v816
    %820 = vrot.lane.b32.xlu0 %v818, 64
    %v821 = vpop.permute.xlu0 %820
    %v823 = vadd.f32 %v817, %v821
    %v824 = vtanh.pop %v823
    %v825 = vmul.f32 %v814, %v824
    %vm826 = vcmp.ge.s32.totalorder %v177, 32
    %vm827 = vcmp.lt.s32.totalorder %v177, 64
    %vm828 = vmand %vm826, %vm827
    %v829 = vsel %vm828, 1, 0
    %vm830 = vcmp.eq.s32.totalorder %v829, 1
    %832 = vrot.lane.b32.xlu0 %v825, 64
    %v833 = vpop.permute.xlu0 %832
    %836 = vrot.lane.b32.xlu0 %v754, 64
    %v837 = vpop.permute.xlu0 %836
    %v839 = vsel %vm830, %v833, %v837
    %v840 = vld [vmem:[%s3] sm:$0xff]
    %v841 = vld [vmem:[%s3 + $0x8] sm:$0xff]
    %v842 = vld [vmem:[%s3 + $0x10] sm:$0xff]
    %v843 = vld [vmem:[%s3 + $0x18] sm:$0xff]
    %v844 = vld [vmem:[%s3 + $0x20] sm:$0x1]
    %v845 = vlaneseq
    %v846 = vshrl.u32 %v845, 7
    %v847 = vsub.s32 0, %v846
    %v848 = vrot.slane %v844, %v847
    %850 = vrot.lane.b32.xlu0 %v839, 96
    %v851 = vpop.permute.xlu0 %850
    %vm852 = vcmask 261120
    %v853 = vsel %vm852, %v851, 0
    %855 = vmatprep.subr.mxu0 0.0
    %856 = vmatpush1.msra.mxu0 %v840
    %857 = vmatprep.subr.mxu0 0.0
    %858 = vmatpush1.msra.mxu0 %v841
    %859 = vmatprep.subr.mxu0 0.0
    %860 = vmatpush1.msra.mxu0 %v842
    %861 = vmatprep.subr.mxu0 0.0
    %862 = vmatpush1.msra.mxu0 %v843
    %863 = vmatprep.subr.mxu0 0.0
    %864 = vmatpush1.msra.mxu0 0.0
    %865 = vmatprep.subr.mxu0 0.0
    %866 = vmatpush1.msra.mxu0 0.0
    %867 = vmatprep.subr.mxu0 0.0
    %868 = vmatpush1.msra.mxu0 0.0
    %869 = vmatprep.subr.mxu0 0.0
    %870 = vmatpush1.msra.mxu0 0.0
    %871 = vmatprep.subr.mxu0 0.0
    %872 = vmatpush1.msra.mxu0 0.0
    %873 = vmatprep.subr.mxu0 0.0
    %874 = vmatpush1.msra.mxu0 0.0
    %875 = vmatprep.subr.mxu0 0.0
    %876 = vmatpush1.msra.mxu0 0.0
    %877 = vmatprep.subr.mxu0 0.0
    %878 = vmatpush1.msra.mxu0 0.0
    %879 = vmatprep.subr.mxu0 0.0
    %880 = vmatpush1.msra.mxu0 0.0
    %881 = vmatprep.subr.mxu0 0.0
    %882 = vmatpush1.msra.mxu0 0.0
    %883 = vmatprep.subr.mxu0 0.0
    %884 = vmatpush1.msra.mxu0 0.0
    %885 = vmatprep.subr.mxu0 0.0
    %886 = vmatpush1.msra.mxu0 0.0
    %887 = vmatprep.subr.mxu0 0.0
    %888 = vmatpush1.msra.mxu0 0.0
    %889 = vmatprep.subr.mxu0 0.0
    %890 = vmatpush1.msra.mxu0 0.0
    %891 = vmatprep.subr.mxu0 0.0
    %892 = vmatpush1.msra.mxu0 0.0
    %893 = vmatprep.subr.mxu0 0.0
    %894 = vmatpush1.msra.mxu0 0.0
    %895 = vmatprep.subr.mxu0 0.0
    %896 = vmatpush1.msra.mxu0 0.0
    %897 = vmatprep.subr.mxu0 0.0
    %898 = vmatpush1.msra.mxu0 0.0
    %899 = vmatprep.subr.mxu0 0.0
    %900 = vmatpush1.msra.mxu0 0.0
    %901 = vmatprep.subr.mxu0 0.0
    %902 = vmatpush1.msra.mxu0 0.0
    %903 = vmatprep.subr.mxu0 0.0
    %904 = vmatpush1.msra.mxu0 0.0
    %905 = vmatprep.subr.mxu0 0.0
    %906 = vmatpush1.msra.mxu0 0.0
    %907 = vmatprep.subr.mxu0 0.0
    %908 = vmatpush1.msra.mxu0 0.0
    %909 = vmatprep.subr.mxu0 0.0
    %910 = vmatpush1.msra.mxu0 0.0
    %911 = vmatprep.subr.mxu0 0.0
    %912 = vmatpush1.msra.mxu0 0.0
    %913 = vmatprep.subr.mxu0 0.0
    %914 = vmatpush1.msra.mxu0 0.0
    %915 = vmatprep.subr.mxu0 0.0
    %916 = vmatpush1.msra.mxu0 0.0
    %917 = vmatprep.subr.mxu0 0.0
    %918 = vmatpush1.msra.mxu0 0.0
    %919 = vmatprep.mubr.f32.mxu0 0.0
    %920 = vmatmul.mubr.f32.gmra.mrb[0].mxu0 %v853
    %v921 = vpop.f32.mrb[0].mxu0
    %v922 = vadd.f32 %v848, %v921
    %v923 = vpop.f32.mrb[0].mxu0
    %924 = vdwg.mxu0
    %vm925 = vcmask 31744
    %926 = vst.msk [vmem:[%s4] sm:$0xff] %vm925, %v922
    // Predicated region
    $region26: #{tpu_custom_call.1} parent=1 // pred_check
      _
    $region27: #{tpu_custom_call.1} parent=1 // pred_check_branch
      %928 = sbr.rel (0) target = $region29
    $region28: #{tpu_custom_call.1} parent=1 // pred_region
      _
    $region29: #{tpu_custom_call.1} parent=1 // pred_fallthru
      _
    // Predicated region
    $region30: #{tpu_custom_call.1} parent=1 // pred_check
      _
    $region31: #{tpu_custom_call.1} parent=1 // pred_check_branch
      %930 = sbr.rel (0) target = $region33
    $region32: #{tpu_custom_call.1} parent=1 // pred_region
      _
    $region33: #{tpu_custom_call.1} parent=1 // pred_fallthru
      _
    %931 = vsyncpa [#allocation3], 1
    %932 = vsyncpa [#allocation5], 1

</llo_original>
